<compile_context>
chip_gen: v7x
topology: tpu7x:2x2x1
jax: 0.10.0
libtpu: 0.0.40
codegen_flags: <defaults>
</compile_context>

<pallas_src>
import functools
import numpy as np

import jax
import jax.numpy as jnp
from jax import lax
from jax.experimental import pallas as pl
from jax.experimental.pallas import tpu as pltpu


_VMEM_LIMIT_BYTES = 48 * 1024 * 1024  # below v7x's 64 MiB physical, > defaults


def _const_spec(shape):
  """BlockSpec with a constant index map, single-buffered when supported."""
  index_map = lambda *args: (0,) * len(shape)
  try:
    return pl.BlockSpec(shape, index_map, pipeline_mode=pl.Buffered(1))
  except (TypeError, ValueError, AttributeError):
    # Older JAX without pipeline_mode / Buffered: fall back to default buffering.
    return pl.BlockSpec(shape, index_map)


# --------------------------------------------------------------------------
# Projection kernels (grid = (B, S-tiles); blocks (1, ts, D)).
# --------------------------------------------------------------------------
def _linear_kernel(x_ref, w_ref, b_ref, o_ref, *, use_bf16):
  x = x_ref[0]                           # (ts, D)
  w = w_ref[...]                         # (D, D), resident (Buffered(1))
  if use_bf16:
    x = x.astype(jnp.bfloat16)
    w = w.astype(jnp.bfloat16)
  o_ref[0] = (jnp.dot(x, w, preferred_element_type=jnp.float32)
              + b_ref[...]).astype(o_ref.dtype)


def _kv_proj_kernel(k_ref, v_ref, wk_ref, bk_ref, wv_ref, bv_ref,
                    kp_ref, vp_ref, *, use_bf16):
  k = k_ref[0]
  v = v_ref[0]
  wk = wk_ref[...]
  wv = wv_ref[...]
  if use_bf16:
    k = k.astype(jnp.bfloat16)
    v = v.astype(jnp.bfloat16)
    wk = wk.astype(jnp.bfloat16)
    wv = wv.astype(jnp.bfloat16)
  kp_ref[0] = (jnp.dot(k, wk, preferred_element_type=jnp.float32)
               + bk_ref[...]).astype(kp_ref.dtype)
  vp_ref[0] = (jnp.dot(v, wv, preferred_element_type=jnp.float32)
               + bv_ref[...]).astype(vp_ref.dtype)


# --------------------------------------------------------------------------
# Attention + fused output projection (grid = (B, Sq-tiles)).
# --------------------------------------------------------------------------
def _attention_kernel(qp_ref, kp_ref, vp_ref, wo_ref, bo_ref,
                      out_ref, prob_ref, ctx_scr, *,
                      num_head, masked, use_bf16):
  # Block shapes per grid step (batch b, q-tile t):
  #   qp (1, TQ, D), kp/vp (1, Sk, D), wo (D, D), bo (1, D),
  #   out (1, TQ, D), prob (1, H, TQ, Sk), ctx_scr (H, TQ, hd) VMEM scratch.
  qp = qp_ref[0]                          # (TQ, D)
  kp = kp_ref[0]                          # (Sk, D)
  vp = vp_ref[0]                          # (Sk, D)

  tq, d = qp.shape
  sk = kp.shape[0]
  head_dim = d // num_head
  scale = 1.0 / float(np.sqrt(head_dim))

  # Head-major views, built once per grid step; the per-pair slices below are
  # then zero-cost leading-dim slices (no stack/concatenate glue in the loop).
  qh = jnp.transpose(qp.reshape(tq, num_head, head_dim), (1, 0, 2))   # (H,TQ,hd)
  kh = jnp.transpose(kp.reshape(sk, num_head, head_dim), (1, 0, 2))   # (H,Sk,hd)
  vh = jnp.transpose(vp.reshape(sk, num_head, head_dim), (1, 0, 2))   # (H,Sk,hd)

  if masked:
    ti = pl.program_id(1)
    row = ti * tq + lax.broadcasted_iota(jnp.int32, (tq, sk), 0)
    col = lax.broadcasted_iota(jnp.int32, (tq, sk), 1)
    mask_add = jnp.where(col <= row, 0.0, -jnp.inf).astype(jnp.float32)

  mm_dtype = jnp.bfloat16 if use_bf16 else None

  # TODO(synk): for very long Sk, move head pairs onto an 'arbitrary' grid axis
  # and stream Sk-tiles flash-style; the full (Sq, Sk) qk_weight output this
  # module returns forces full-Sk materialization, so it is kept resident here.
  pair = 2 if num_head % 2 == 0 else 1
  for h0 in range(0, num_head, pair):
    qg = qh[h0:h0 + pair]                 # (pair, TQ, hd)
    kg = kh[h0:h0 + pair]                 # (pair, Sk, hd)
    vg = vh[h0:h0 + pair]                 # (pair, Sk, hd)

    # QK^T batched over the head pair, contracting the last dims (no explicit
    # transpose).  Always f32 so the returned probabilities stay precise.
    s = jnp.einsum("gqd,gkd->gqk", qg, kg,
                   preferred_element_type=jnp.float32) * scale
    if masked:
      s = s + mask_add[None]
    s = s - jnp.max(s, axis=-1, keepdims=True)
    e = jnp.exp(s)
    p = e * pl.reciprocal(jnp.sum(e, axis=-1, keepdims=True))   # exact recip

    # Immediate, lane-dense store of this pair's probabilities: bounds vreg
    # liveness to a single head pair's (TQ, Sk) intermediates.
    prob_ref[0, h0:h0 + pair] = p.astype(prob_ref.dtype)

    if mm_dtype is not None:
      pv = jnp.einsum("gqk,gkd->gqd", p.astype(mm_dtype), vg.astype(mm_dtype),
                      preferred_element_type=jnp.float32)
    else:
      pv = jnp.einsum("gqk,gkd->gqd", p, vg,
                      preferred_element_type=jnp.float32)
    ctx_scr[h0:h0 + pair] = pv            # (pair, TQ, hd) -> scratch slab

  # Fused, full-depth (K = D) output projection from the context accumulator.
  ctx = jnp.transpose(ctx_scr[...], (1, 0, 2)).reshape(tq, d)
  wo = wo_ref[...]
  if mm_dtype is not None:
    ctx = ctx.astype(mm_dtype)
    wo = wo.astype(mm_dtype)
  out = jnp.dot(ctx, wo, preferred_element_type=jnp.float32) + bo_ref[...]
  out_ref[0] = out.astype(out_ref.dtype)


# --------------------------------------------------------------------------
# Wrapper.
# --------------------------------------------------------------------------
def transformer_block(q, k, v, params, *, num_head=8, masked=False,
                      use_bf16_matmul=False):
  """params: wq/wk/wv/wo as (d_model, d_model) in (in, out) form; b* as (d_model,)."""
  qb, qs, d_model = q.shape
  kb, ks, kd = k.shape
  assert v.shape == k.shape and qb == kb and d_model == kd
  assert d_model % num_head == 0
  if masked:
    # Reference builds a (Sq, Sq) tril; causal masking only defined for Sq == Sk.
    assert qs == ks, "causal mask requires Sq == Sk"

  bq = params["bq"].reshape(1, d_model)
  bk = params["bk"].reshape(1, d_model)
  bv = params["bv"].reshape(1, d_model)
  bo = params["bo"].reshape(1, d_model)

  cparams = pltpu.CompilerParams(
      dimension_semantics=("parallel", "parallel"),
      vmem_limit_bytes=_VMEM_LIMIT_BYTES)

  # TODO(synk): for d_model >~ 2K, add an output-dim tile axis over the (D, D)
  # weights (keeps per-step weight footprint at tn*D) instead of holding the
  # full weight resident.
  w_spec = _const_spec((d_model, d_model))   # constant index, single-buffered
  b_spec = _const_spec((1, d_model))

  def _rows_spec(ts):
    return pl.BlockSpec((1, ts, d_model), lambda bi, ti: (bi, ti, 0))

  # ---- 1a) Q projection: grid (B, Sq-tiles); output directly (B, Sq, D). ---
  ts_q = qs if qs <= 512 else 512
  qp = pl.pallas_call(
      functools.partial(_linear_kernel, use_bf16=use_bf16_matmul),
      out_shape=jax.ShapeDtypeStruct((qb, qs, d_model), q.dtype),
      grid_spec=pltpu.PrefetchScalarGridSpec(
          num_scalar_prefetch=0,
          grid=(qb, pl.cdiv(qs, ts_q)),
          in_specs=[_rows_spec(ts_q), w_spec, b_spec],
          out_specs=_rows_spec(ts_q)),
      compiler_params=cparams,
  )(q, params["wq"], bq)

  # ---- 1b) Fused K/V projection: grid (B, Sk-tiles); independent of Sq. ----
  ts_k = ks if ks <= 512 else 512
  kp, vp = pl.pallas_call(
      functools.partial(_kv_proj_kernel, use_bf16=use_bf16_matmul),
      out_shape=(jax.ShapeDtypeStruct((kb, ks, d_model), k.dtype),) * 2,
      grid_spec=pltpu.PrefetchScalarGridSpec(
          num_scalar_prefetch=0,
          grid=(kb, pl.cdiv(ks, ts_k)),
          in_specs=[_rows_spec(ts_k), _rows_spec(ts_k),
                    w_spec, b_spec, w_spec, b_spec],
          out_specs=[_rows_spec(ts_k), _rows_spec(ts_k)]),
      compiler_params=cparams,
  )(k, v, params["wk"], bk, params["wv"], bv)

  # ---- 2) Attention + fused output projection, grid (B, Sq-tiles). ---------
  tq = qs if qs <= 128 else 128
  nqt = pl.cdiv(qs, tq)
  kernel = functools.partial(_attention_kernel, num_head=num_head,
                             masked=masked, use_bf16=use_bf16_matmul)
  out, prob = pl.pallas_call(
      kernel,
      out_shape=(
          jax.ShapeDtypeStruct((qb, qs, d_model), q.dtype),
          jax.ShapeDtypeStruct((qb, num_head, qs, ks), jnp.float32),
      ),
      grid_spec=pltpu.PrefetchScalarGridSpec(
          num_scalar_prefetch=0,
          grid=(qb, nqt),
          in_specs=[
              pl.BlockSpec((1, tq, d_model), lambda bi, ti: (bi, ti, 0)),
              pl.BlockSpec((1, ks, d_model), lambda bi, ti: (bi, 0, 0)),
              pl.BlockSpec((1, ks, d_model), lambda bi, ti: (bi, 0, 0)),
              w_spec, b_spec,
          ],
          out_specs=[
              pl.BlockSpec((1, tq, d_model), lambda bi, ti: (bi, ti, 0)),
              pl.BlockSpec((1, num_head, tq, ks), lambda bi, ti: (bi, 0, ti, 0)),
          ],
          scratch_shapes=[pltpu.VMEM((num_head, tq, d_model // num_head),
                                     jnp.float32)]),
      compiler_params=cparams,
  )(qp, kp, vp, params["wo"], bo)
  return out, prob


# --------------------------------------------------------------------------
# Pure-JAX reference matching the PyTorch forward.
# --------------------------------------------------------------------------
def _reference(q, k, v, params, *, num_head, masked):
  qb, qs, d = q.shape
  kb, ks, _ = k.shape
  hd = d // num_head

  def lin(x, w, b):
    return x @ w + b

  qp = lin(q, params["wq"], params["bq"]).reshape(qb, qs, num_head, hd)
  kp = lin(k, params["wk"], params["bk"]).reshape(kb, ks, num_head, hd)
  vp = lin(v, params["wv"], params["bv"]).reshape(kb, ks, num_head, hd)
  qp = jnp.transpose(qp, (0, 2, 1, 3))
  kp = jnp.transpose(kp, (0, 2, 1, 3))
  vp = jnp.transpose(vp, (0, 2, 1, 3))
  w = jnp.einsum("bhqd,bhkd->bhqk", qp, kp) / np.sqrt(hd)
  if masked:
    tri = jnp.tril(jnp.ones((qs, qs)))
    mask = jnp.where(tri > 0, 0.0, -jnp.inf)
    w = w + mask[:qs, :qs]
  w = jax.nn.softmax(w, axis=-1)
  attn = jnp.einsum("bhqk,bhkd->bhqd", w, vp)
  attn = jnp.transpose(attn, (0, 2, 1, 3)).reshape(qb, qs, d)
  attn = lin(attn, params["wo"], params["bo"])
  return attn, w


if __name__ == "__main__":
  # Default-consistent small shapes: batch=2, seq=8, d_model=512, heads=8.
  B, S, D, H = 2, 8, 512, 8

  key = jax.random.PRNGKey(0)
  keys = jax.random.split(key, 11)
  bound = 1.0 / np.sqrt(D)

  params = {
      "wq": jax.random.uniform(keys[0], (D, D), jnp.float32, -bound, bound),
      "bq": jax.random.uniform(keys[1], (D,), jnp.float32, -bound, bound),
      "wk": jax.random.uniform(keys[2], (D, D), jnp.float32, -bound, bound),
      "bk": jax.random.uniform(keys[3], (D,), jnp.float32, -bound, bound),
      "wv": jax.random.uniform(keys[4], (D, D), jnp.float32, -bound, bound),
      "bv": jax.random.uniform(keys[5], (D,), jnp.float32, -bound, bound),
      "wo": jax.random.uniform(keys[6], (D, D), jnp.float32, -bound, bound),
      "bo": jax.random.uniform(keys[7], (D,), jnp.float32, -bound, bound),
  }

  q = jax.random.normal(keys[8], (B, S, D), jnp.float32)
  k = jax.random.normal(keys[9], (B, S, D), jnp.float32)
  v = jax.random.normal(keys[10], (B, S, D), jnp.float32)

  # Unmasked (cross-attention style) path, full f32.
  out, prob = transformer_block(q, k, v, params, num_head=H, masked=False)
  out = jax.block_until_ready(out)
  prob = jax.block_until_ready(prob)
  ref_out, ref_prob = _reference(q, k, v, params, num_head=H, masked=False)
  assert out.shape == (B, S, D) and prob.shape == (B, H, S, S)
  assert jnp.allclose(out, ref_out, rtol=1e-4, atol=1e-4), "attn output mismatch"
  assert jnp.allclose(prob, ref_prob, rtol=1e-4, atol=1e-5), "qk_weight mismatch"

  # Causal-masked path (Sq == Sk, matching the reference tril semantics).
  m_out, m_prob = transformer_block(q, k, v, params, num_head=H, masked=True)
  m_out = jax.block_until_ready(m_out)
  m_prob = jax.block_until_ready(m_prob)
  rm_out, rm_prob = _reference(q, k, v, params, num_head=H, masked=True)
  assert jnp.allclose(m_out, rm_out, rtol=1e-4, atol=1e-4), "masked output mismatch"
  assert jnp.allclose(m_prob, rm_prob, rtol=1e-4, atol=1e-5), "masked qk_weight mismatch"

  # bf16-matmul path (f32 QK^T/softmax); loose tolerance sanity check only.
  b_out, b_prob = transformer_block(q, k, v, params, num_head=H, masked=False,
                                    use_bf16_matmul=True)
  b_out = jax.block_until_ready(b_out)
  b_prob = jax.block_until_ready(b_prob)
  assert jnp.allclose(b_out, ref_out, rtol=5e-2, atol=5e-2), "bf16 output mismatch"
  assert jnp.allclose(b_prob, ref_prob, rtol=5e-2, atol=5e-2), "bf16 qk_weight mismatch"

  print("KERNEL_OK")
</pallas_src>

<mosaic_0001>
module attributes {stable_mosaic.version = 11 : i64} {
  func.func @_linear_kernel(%arg0: i32, %arg1: i32, %arg2: memref<1x8x512xf32, #tpu.memory_space<vmem>>, %arg3: memref<512x512xf32, #tpu.memory_space<vmem>>, %arg4: memref<1x512xf32, #tpu.memory_space<vmem>>, %arg5: memref<1x8x512xf32, #tpu.memory_space<vmem>>) attributes {dimension_semantics = [#tpu.dimension_semantics<parallel>, #tpu.dimension_semantics<parallel>], iteration_bounds = array<i64: 2, 1>, scalar_prefetch = 0 : i64, scratch_operands = 0 : i64, tpu.core_type = #tpu.core_type<tc>, window_params = [{transform_indices = @transform_0, window_bounds = array<i64: 1, 8, 512>}, {pipeline_mode = #tpu.pipeline_mode<synchronous>, transform_indices = @transform_1, window_bounds = array<i64: 512, 512>}, {pipeline_mode = #tpu.pipeline_mode<synchronous>, transform_indices = @transform_2, window_bounds = array<i64: 1, 512>}, {transform_indices = @transform_3, window_bounds = array<i64: 1, 8, 512>}]} {
    %c0 = arith.constant 0 : index
    %c0_0 = arith.constant 0 : index
    %c0_1 = arith.constant 0 : index
    %0 = vector.load %arg2[%c0, %c0_0, %c0_1] : memref<1x8x512xf32, #tpu.memory_space<vmem>>, vector<1x8x512xf32>
    %1 = vector.shape_cast %0 : vector<1x8x512xf32> to vector<8x512xf32>
    %c0_2 = arith.constant 0 : index
    %c0_3 = arith.constant 0 : index
    %2 = vector.load %arg3[%c0_2, %c0_3] : memref<512x512xf32, #tpu.memory_space<vmem>>, vector<512x512xf32>
    %cst = arith.constant dense<0.000000e+00> : vector<8x512xf32>
    %3 = tpu.matmul %1, %2, %cst {dimension_numbers = #tpu.dot_dimension_numbers<[1], [0], [0], [1], [0, 0, 1, 1], [], []>} : vector<8x512xf32>, vector<512x512xf32>, vector<8x512xf32> -> vector<8x512xf32>
    %c0_4 = arith.constant 0 : index
    %c0_5 = arith.constant 0 : index
    %4 = vector.load %arg4[%c0_4, %c0_5] : memref<1x512xf32, #tpu.memory_space<vmem>>, vector<1x512xf32>
    %5 = vector.broadcast %4 : vector<1x512xf32> to vector<8x512xf32>
    %6 = arith.addf %3, %5 : vector<8x512xf32>
    %c0_6 = arith.constant 0 : index
    %c0_7 = arith.constant 0 : index
    %c0_8 = arith.constant 0 : index
    %7 = vector.load %arg5[%c0_6, %c0_7, %c0_8] : memref<1x8x512xf32, #tpu.memory_space<vmem>>, vector<1x8x512xf32>
    %8 = vector.shape_cast %7 : vector<1x8x512xf32> to vector<8x512xf32>
    %9 = vector.shape_cast %6 : vector<8x512xf32> to vector<1x8x512xf32>
    tpu.vector_store %arg5[%c0_6, %c0_7, %c0_8], %9 {strides = array<i32>} : memref<1x8x512xf32, #tpu.memory_space<vmem>>, vector<1x8x512xf32>,
    return
  }
  func.func @transform_0(%arg0: i32, %arg1: i32) -> (i32, i32, i32) {
    %c0_i32 = arith.constant 0 : i32
    %c0_i32_0 = arith.constant 0 : i32
    return %arg0, %arg1, %c0_i32 : i32, i32, i32
  }
  func.func @transform_1(%arg0: i32, %arg1: i32) -> (i32, i32) {
    %c0_i32 = arith.constant 0 : i32
    %c0_i32_0 = arith.constant 0 : i32
    %c0_i32_1 = arith.constant 0 : i32
    return %c0_i32, %c0_i32_0 : i32, i32
  }
  func.func @transform_2(%arg0: i32, %arg1: i32) -> (i32, i32) {
    %c0_i32 = arith.constant 0 : i32
    %c0_i32_0 = arith.constant 0 : i32
    %c0_i32_1 = arith.constant 0 : i32
    return %c0_i32, %c0_i32_0 : i32, i32
  }
  func.func @transform_3(%arg0: i32, %arg1: i32) -> (i32, i32, i32) {
    %c0_i32 = arith.constant 0 : i32
    %c0_i32_0 = arith.constant 0 : i32
    return %arg0, %arg1, %c0_i32 : i32, i32, i32
  }
}

</mosaic_0001>

<llo_original>
// kernel: tpu_custom_call.1
$region0: #{tpu_custom_call.1}
  #allocation0 [shape = 'u32[]', space=smem, size = 0x4, offset = 0x4, fixed_abs, tag = 'smem constant byte address 0x4 - core index']
  #allocation1 [shape = 'u32[144,128]{1,0:T(1,128)}', space=vmem, size = 0x12000, scoped, tag = 'internal scratch']
  %s0 = inlined_call_operand.hbm [shape: f32[2,8,512], index: 0, kind: input, shape index: {}]
  %s1 = inlined_call_operand.hbm [shape: f32[512,512], index: 1, kind: input, shape index: {}]
  %s2 = inlined_call_operand.vmem [shape: f32[1,512], index: 2, kind: input, shape index: {}]
  %s3 = inlined_call_operand.hbm [shape: f32[2,8,512], index: 3, kind: output, shape index: {}]
  %s4 = sld [smem:[#allocation0]]
  $region53: #{tpu_custom_call.1} parent=0
    _
  %s6 = ssub.s32 1, %s4
  %s7 = scalar_select 0, %s6, %s4
  $region1: #{tpu_custom_call.1} parent=0
    #allocation2 [shape = 'u8[32768]{0}', space=vmem, size = 0x8000, scoped, tag = 'input window, operand 0']
    #allocation3 [shape = 's32[2]{0}', space=sflag, size = 0x8, scoped, tag = 'scoped memory for tpu_custom_call.1']
    #allocation4 [shape = 's32[2]{0}', space=sflag, size = 0x8, scoped, tag = 'scoped memory for tpu_custom_call.1']
    #allocation5 [shape = 'u8[1048576]{0}', space=vmem, size = 0x100000, scoped, tag = 'input window, operand 1, single buffered']
    #allocation6 [shape = 's32[1]{0}', space=sflag, size = 0x4, scoped, tag = 'scoped memory for tpu_custom_call.1']
    #allocation7 [shape = 'u8[32768]{0}', space=vmem, size = 0x8000, scoped, tag = 'output window, operand 0']
    %8 = vsyncpa [#allocation3], 0
    %s9 = scalar_lea.sflag [#allocation3], 1
    %10 = vsyncpa %s9, 0
    %11 = vsyncpa [#allocation6], 0
    %12 = vsyncpa [#allocation4], 0
    %s13 = scalar_lea.sflag [#allocation4], 1
    %14 = vsyncpa %s13, 0
    loop: start=0, step=1, limit=4
    $region2: #{tpu_custom_call.1} parent=1 // loop_pre_header
      _
    $region3: #{tpu_custom_call.1} parent=1 // loop_header
      %s16 = sphi 0, %s20
      %p17 = scmp.ge.s32.totalorder %s16, 4
      %s23 = sphi 0, %s35
      %s24 = sphi 0, %s31
      %s25 = sphi 0, %s23
      %s26 = sphi 0, %s24
      %s27 = sphi 0, %s25
      %s28 = sphi 0, %s26
      %s40 = sphi 0, %s42
      %s43 = sphi 0, %s40
      %s44 = sphi 0, %s43
      %s60 = sphi 0, %s44
      %s64 = sphi 0, %s64
      %s66 = sphi 0, %s64
      %s67 = sphi 0, %s66
      %s81 = sphi 0, %s67
      %s85 = sphi 0, %s85
      %s87 = sphi 0, %s85
      %s88 = sphi 0, %s87
      %s102 = sphi 0, %s88
      %s110 = sphi 0, %s112
      %s113 = sphi 0, %s110
      %s114 = sphi 0, %s113
      %s130 = sphi 0, %s114
    $region4: #{tpu_custom_call.1} parent=1 // loop_header_branch
      %19 = sbr.rel (%p17) target = $region8
    $region5: #{tpu_custom_call.1} parent=1 // loop_body
      %s21 = ssub.s32 %s16, 1
      %s22 = ssub.s32 %s16, 2
      %s29 = sadd.s32 1, %s24
      %p30 = scmp.ge.s32.totalorder %s29, 1
      %s31 = scalar_select %p30, 0, %s29
      %s32 = sadd.s32 1, %s23
      %s33 = scalar_select %p30, %s32, %s23
      %p34 = scmp.ge.s32.totalorder %s33, 2
      %s35 = scalar_select %p34, 0, %s33
      %s36 = ssub.s32 %s23, %s35
      %s37 = ssub.s32 %s24, %s31
      %s38 = sor.u32 %s36, %s37
      %p39 = scmp.eq.s32.totalorder %s38, 0
      %s41 = sadd.s32 %s40, 1
      %s42 = scalar_select %p39, %s40, %s41
      %p45 = pneg %p39
      %p46 = scmp.eq.s32.totalorder %s16, 1
      %p47 = por %p45, %p46
      %p48 = scmp.ne.s32.totalorder %s40, %s43
      %p49 = scmp.eq.s32.totalorder %s16, 0
      %p50 = por %p48, %p49
      %p51 = scmp.ne.s32.totalorder %s40, %s43
      %p52 = scmp.eq.s32.totalorder %s21, 1
      %p53 = por %p51, %p52
      %p54 = scmp.ne.s32.totalorder %s43, %s44
      %p55 = scmp.eq.s32.totalorder %s21, 0
      %p56 = por %p54, %p55
      %p57 = scmp.ne.s32.totalorder %s43, %s44
      %p58 = scmp.eq.s32.totalorder %s22, 1
      %p59 = por %p57, %p58
      %p61 = scmp.ne.s32.totalorder %s44, %s60
      %p62 = scmp.eq.s32.totalorder %s22, 0
      %p63 = por %p61, %p62
      %s65 = sadd.s32 %s64, 1
      %p68 = scmp.eq.s32.totalorder %s16, 1
      %p69 = scmp.ne.s32.totalorder %s64, %s66
      %p70 = scmp.eq.s32.totalorder %s16, 0
      %p71 = por %p69, %p70
      %p72 = scmp.ne.s32.totalorder %s64, %s66
      %p73 = scmp.eq.s32.totalorder %s21, 1
      %p74 = por %p72, %p73
      %p75 = scmp.ne.s32.totalorder %s66, %s67
      %p76 = scmp.eq.s32.totalorder %s21, 0
      %p77 = por %p75, %p76
      %p78 = scmp.ne.s32.totalorder %s66, %s67
      %p79 = scmp.eq.s32.totalorder %s22, 1
      %p80 = por %p78, %p79
      %p82 = scmp.ne.s32.totalorder %s67, %s81
      %p83 = scmp.eq.s32.totalorder %s22, 0
      %p84 = por %p82, %p83
      %s86 = sadd.s32 %s85, 1
      %p89 = scmp.eq.s32.totalorder %s16, 1
      %p90 = scmp.ne.s32.totalorder %s85, %s87
      %p91 = scmp.eq.s32.totalorder %s16, 0
      %p92 = por %p90, %p91
      %p93 = scmp.ne.s32.totalorder %s85, %s87
      %p94 = scmp.eq.s32.totalorder %s21, 1
      %p95 = por %p93, %p94
      %p96 = scmp.ne.s32.totalorder %s87, %s88
      %p97 = scmp.eq.s32.totalorder %s21, 0
      %p98 = por %p96, %p97
      %p99 = scmp.ne.s32.totalorder %s87, %s88
      %p100 = scmp.eq.s32.totalorder %s22, 1
      %p101 = por %p99, %p100
      %p103 = scmp.ne.s32.totalorder %s88, %s102
      %p104 = scmp.eq.s32.totalorder %s22, 0
      %p105 = por %p103, %p104
      %s106 = ssub.s32 %s23, %s35
      %s107 = ssub.s32 %s24, %s31
      %s108 = sor.u32 %s106, %s107
      %p109 = scmp.eq.s32.totalorder %s108, 0
      %s111 = sadd.s32 %s110, 1
      %s112 = scalar_select %p109, %s110, %s111
      %p115 = pneg %p109
      %p116 = scmp.eq.s32.totalorder %s16, 1
      %p117 = por %p115, %p116
      %p118 = scmp.ne.s32.totalorder %s110, %s113
      %p119 = scmp.eq.s32.totalorder %s16, 0
      %p120 = por %p118, %p119
      %p121 = scmp.ne.s32.totalorder %s110, %s113
      %p122 = scmp.eq.s32.totalorder %s21, 1
      %p123 = por %p121, %p122
      %p124 = scmp.ne.s32.totalorder %s113, %s114
      %p125 = scmp.eq.s32.totalorder %s21, 0
      %p126 = por %p124, %p125
      %p127 = scmp.ne.s32.totalorder %s113, %s114
      %p128 = scmp.eq.s32.totalorder %s22, 1
      %p129 = por %p127, %p128
      %p131 = scmp.ne.s32.totalorder %s114, %s130
      %p132 = scmp.eq.s32.totalorder %s22, 0
      %p133 = por %p131, %p132
      %p134 = scmp.le.s32.totalorder 1, %s16
      %p135 = scmp.lt.s32.totalorder %s16, 3
      %p136 = pnand %p134, %p135
      %p137 = pneg %p136
      // Predicated region
      $region9: #{tpu_custom_call.1} parent=5 // pred_check
        _
      $region10: #{tpu_custom_call.1} parent=5 // pred_check_branch
        %139 = sbr.rel (%p136) target = $region12
      $region11: #{tpu_custom_call.1} parent=5 // pred_region
        %s140 = ssub.s32 %s16, 1
        // Predicated region
        $region13: #{tpu_custom_call.1} parent=11 // pred_check
          %p141 = pneg %p77
        $region14: #{tpu_custom_call.1} parent=11 // pred_check_branch
          %143 = sbr.rel (%p141) target = $region16
        $region15: #{tpu_custom_call.1} parent=11 // pred_region
          %s145 = ssub.s32 32768, 32768
          %146 = vsyncadd [#allocation6], %s145
          %s147 = sshll.u32 [#allocation5], 4
          %s148 = int_to_ptr.vmem [resolvable:$true] %s147
          %153 = dma.hbm_to_vmem [thread:$0]  %s1, 32768, %s148, [#allocation6], 512, 512, 32
        $region16: #{tpu_custom_call.1} parent=11 // pred_fallthru
          _
        // Predicated region
        $region17: #{tpu_custom_call.1} parent=11 // pred_check
          %p154 = pneg %p98
        $region18: #{tpu_custom_call.1} parent=11 // pred_check_branch
          %156 = sbr.rel (%p154) target = $region20
        $region19: #{tpu_custom_call.1} parent=11 // pred_region
          _
        $region20: #{tpu_custom_call.1} parent=11 // pred_fallthru
          _
      $region12: #{tpu_custom_call.1} parent=5 // pred_fallthru
        _
      %p157 = scmp.lt.s32.totalorder %s16, 2
      // Predicated region
      $region21: #{tpu_custom_call.1} parent=5 // pred_check
        %p158 = pneg %p157
      $region22: #{tpu_custom_call.1} parent=5 // pred_check_branch
        %160 = sbr.rel (%p158) target = $region24
      $region23: #{tpu_custom_call.1} parent=5 // pred_region
        // Predicated region
        $region25: #{tpu_custom_call.1} parent=23 // pred_check
          %p161 = pneg %p50
        $region26: #{tpu_custom_call.1} parent=23 // pred_check_branch
          %163 = sbr.rel (%p161) target = $region28
        $region27: #{tpu_custom_call.1} parent=23 // pred_region
          %s164 = sand.u32 %s40, 1
          %s165 = scalar_lea.sflag [#allocation3], %s164
          %s166 = sand.u32 %s40, 1
          %s167 = smul.addr %s166, 32
          %s168 = scalar_lea.vmem [#allocation2], %s167
          %s170 = ssub.s32 512, 512
          %171 = vsyncadd %s165, %s170
          %s172 = smul.addr %s24, 4
          %s173 = smul.addr %s23, 4
          %s174 = sadd.s32 %s172, %s173
          %s175 = smul.addr %s174, 128
          %s176 = scalar_lea.hbm %s0, %s175
          %s178 = sshll.u32 %s168, 4
          %s179 = int_to_ptr.vmem [resolvable:$true] %s178
          %181 = dma.hbm_to_vmem [thread:$0]  %s176, 512, %s179, %s165
        $region28: #{tpu_custom_call.1} parent=23 // pred_fallthru
          _
      $region24: #{tpu_custom_call.1} parent=5 // pred_fallthru
        _
      %p182 = scmp.le.s32.totalorder 1, %s16
      %p183 = scmp.lt.s32.totalorder %s16, 3
      %p184 = pnand %p182, %p183
      %p185 = pneg %p184
      // Predicated region
      $region29: #{tpu_custom_call.1} parent=5 // pred_check
        _
      $region30: #{tpu_custom_call.1} parent=5 // pred_check_branch
        %187 = sbr.rel (%p184) target = $region32
      $region31: #{tpu_custom_call.1} parent=5 // pred_region
        %s188 = ssub.s32 %s16, 1
        %s189 = sand.u32 %s43, 1
        %s190 = scalar_lea.sflag [#allocation3], %s189
        %s191 = sand.u32 %s43, 1
        %s192 = smul.addr %s191, 32
        %s193 = scalar_lea.vmem [#allocation2], %s192
        // Predicated region
        $region33: #{tpu_custom_call.1} parent=31 // pred_check
          %p194 = pneg %p56
        $region34: #{tpu_custom_call.1} parent=31 // pred_check_branch
          %196 = sbr.rel (%p194) target = $region36
        $region35: #{tpu_custom_call.1} parent=31 // pred_region
          %197 = dma.done %s190, 512
        $region36: #{tpu_custom_call.1} parent=31 // pred_fallthru
          _
        // Predicated region
        $region37: #{tpu_custom_call.1} parent=31 // pred_check
          %p198 = pneg %p77
        $region38: #{tpu_custom_call.1} parent=31 // pred_check_branch
          %200 = sbr.rel (%p198) target = $region40
        $region39: #{tpu_custom_call.1} parent=31 // pred_region
          %201 = dma.done [#allocation6], 32768
        $region40: #{tpu_custom_call.1} parent=31 // pred_fallthru
          _
        %s202 = sand.u32 %s43, 1
        %s203 = scalar_lea.sflag [#allocation3], %s202
        %s204 = sand.u32 %s43, 1
        %s205 = smul.addr %s204, 32
        %s206 = scalar_lea.vmem [#allocation2], %s205
        %p207 = pneg %p56
        %p208 = pneg %p53
        %p209 = pneg %p77
        %p210 = pneg %p74
        %p211 = pneg %p98
        %p212 = pneg %p95
        %p213 = pneg %p126
        %p214 = pneg %p123
        %s215 = sand.u32 %s113, 1
        %s216 = scalar_lea.sflag [#allocation4], %s215
        %s217 = sand.u32 %s113, 1
        %s218 = smul.addr %s217, 32
        %s219 = scalar_lea.vmem [#allocation7], %s218
        %v220 = vld [vmem:[%s193] sm:$0xff]
        %v221 = vld [vmem:[%s193 + $0x8] sm:$0xff]
        %v222 = vld [vmem:[%s193 + $0x10] sm:$0xff]
        %v223 = vld [vmem:[%s193 + $0x18] sm:$0xff]
        %v224 = vld [vmem:[#allocation5] sm:$0xff]
        %v225 = vld [vmem:[#allocation5 + $0x8] sm:$0xff]
        %v226 = vld [vmem:[#allocation5 + $0x10] sm:$0xff]
        %v227 = vld [vmem:[#allocation5 + $0x18] sm:$0xff]
        %v228 = vld [vmem:[#allocation5 + $0x20] sm:$0xff]
        %v229 = vld [vmem:[#allocation5 + $0x28] sm:$0xff]
        %v230 = vld [vmem:[#allocation5 + $0x30] sm:$0xff]
        %v231 = vld [vmem:[#allocation5 + $0x38] sm:$0xff]
        %v232 = vld [vmem:[#allocation5 + $0x40] sm:$0xff]
        %v233 = vld [vmem:[#allocation5 + $0x48] sm:$0xff]
        %v234 = vld [vmem:[#allocation5 + $0x50] sm:$0xff]
        %v235 = vld [vmem:[#allocation5 + $0x58] sm:$0xff]
        %v236 = vld [vmem:[#allocation5 + $0x60] sm:$0xff]
        %v237 = vld [vmem:[#allocation5 + $0x68] sm:$0xff]
        %v238 = vld [vmem:[#allocation5 + $0x70] sm:$0xff]
        %v239 = vld [vmem:[#allocation5 + $0x78] sm:$0xff]
        %v240 = vld [vmem:[#allocation5 + $0x80] sm:$0xff]
        %v241 = vld [vmem:[#allocation5 + $0x88] sm:$0xff]
        %v242 = vld [vmem:[#allocation5 + $0x90] sm:$0xff]
        %v243 = vld [vmem:[#allocation5 + $0x98] sm:$0xff]
        %v244 = vld [vmem:[#allocation5 + $0xa0] sm:$0xff]
        %v245 = vld [vmem:[#allocation5 + $0xa8] sm:$0xff]
        %v246 = vld [vmem:[#allocation5 + $0xb0] sm:$0xff]
        %v247 = vld [vmem:[#allocation5 + $0xb8] sm:$0xff]
        %v248 = vld [vmem:[#allocation5 + $0xc0] sm:$0xff]
        %v249 = vld [vmem:[#allocation5 + $0xc8] sm:$0xff]
        %v250 = vld [vmem:[#allocation5 + $0xd0] sm:$0xff]
        %v251 = vld [vmem:[#allocation5 + $0xd8] sm:$0xff]
        %v252 = vld [vmem:[#allocation5 + $0xe0] sm:$0xff]
        %v253 = vld [vmem:[#allocation5 + $0xe8] sm:$0xff]
        %v254 = vld [vmem:[#allocation5 + $0xf0] sm:$0xff]
        %v255 = vld [vmem:[#allocation5 + $0xf8] sm:$0xff]
        %v256 = vld [vmem:[#allocation5 + $0x100] sm:$0xff]
        %v257 = vld [vmem:[#allocation5 + $0x108] sm:$0xff]
        %v258 = vld [vmem:[#allocation5 + $0x110] sm:$0xff]
        %v259 = vld [vmem:[#allocation5 + $0x118] sm:$0xff]
        %v260 = vld [vmem:[#allocation5 + $0x120] sm:$0xff]
        %v261 = vld [vmem:[#allocation5 + $0x128] sm:$0xff]
        %v262 = vld [vmem:[#allocation5 + $0x130] sm:$0xff]
        %v263 = vld [vmem:[#allocation5 + $0x138] sm:$0xff]
        %v264 = vld [vmem:[#allocation5 + $0x140] sm:$0xff]
        %v265 = vld [vmem:[#allocation5 + $0x148] sm:$0xff]
        %v266 = vld [vmem:[#allocation5 + $0x150] sm:$0xff]
        %v267 = vld [vmem:[#allocation5 + $0x158] sm:$0xff]
        %v268 = vld [vmem:[#allocation5 + $0x160] sm:$0xff]
        %v269 = vld [vmem:[#allocation5 + $0x168] sm:$0xff]
        %v270 = vld [vmem:[#allocation5 + $0x170] sm:$0xff]
        %v271 = vld [vmem:[#allocation5 + $0x178] sm:$0xff]
        %v272 = vld [vmem:[#allocation5 + $0x180] sm:$0xff]
        %v273 = vld [vmem:[#allocation5 + $0x188] sm:$0xff]
        %v274 = vld [vmem:[#allocation5 + $0x190] sm:$0xff]
        %v275 = vld [vmem:[#allocation5 + $0x198] sm:$0xff]
        %v276 = vld [vmem:[#allocation5 + $0x1a0] sm:$0xff]
        %v277 = vld [vmem:[#allocation5 + $0x1a8] sm:$0xff]
        %v278 = vld [vmem:[#allocation5 + $0x1b0] sm:$0xff]
        %v279 = vld [vmem:[#allocation5 + $0x1b8] sm:$0xff]
        %v280 = vld [vmem:[#allocation5 + $0x1c0] sm:$0xff]
        %v281 = vld [vmem:[#allocation5 + $0x1c8] sm:$0xff]
        %v282 = vld [vmem:[#allocation5 + $0x1d0] sm:$0xff]
        %v283 = vld [vmem:[#allocation5 + $0x1d8] sm:$0xff]
        %v284 = vld [vmem:[#allocation5 + $0x1e0] sm:$0xff]
        %v285 = vld [vmem:[#allocation5 + $0x1e8] sm:$0xff]
        %v286 = vld [vmem:[#allocation5 + $0x1f0] sm:$0xff]
        %v287 = vld [vmem:[#allocation5 + $0x1f8] sm:$0xff]
        %v288 = vld [vmem:[#allocation5 + $0x200] sm:$0xff]
        %v289 = vld [vmem:[#allocation5 + $0x208] sm:$0xff]
        %v290 = vld [vmem:[#allocation5 + $0x210] sm:$0xff]
        %v291 = vld [vmem:[#allocation5 + $0x218] sm:$0xff]
        %v292 = vld [vmem:[#allocation5 + $0x220] sm:$0xff]
        %v293 = vld [vmem:[#allocation5 + $0x228] sm:$0xff]
        %v294 = vld [vmem:[#allocation5 + $0x230] sm:$0xff]
        %v295 = vld [vmem:[#allocation5 + $0x238] sm:$0xff]
        %v296 = vld [vmem:[#allocation5 + $0x240] sm:$0xff]
        %v297 = vld [vmem:[#allocation5 + $0x248] sm:$0xff]
        %v298 = vld [vmem:[#allocation5 + $0x250] sm:$0xff]
        %v299 = vld [vmem:[#allocation5 + $0x258] sm:$0xff]
        %v300 = vld [vmem:[#allocation5 + $0x260] sm:$0xff]
        %v301 = vld [vmem:[#allocation5 + $0x268] sm:$0xff]
        %v302 = vld [vmem:[#allocation5 + $0x270] sm:$0xff]
        %v303 = vld [vmem:[#allocation5 + $0x278] sm:$0xff]
        %v304 = vld [vmem:[#allocation5 + $0x280] sm:$0xff]
        %v305 = vld [vmem:[#allocation5 + $0x288] sm:$0xff]
        %v306 = vld [vmem:[#allocation5 + $0x290] sm:$0xff]
        %v307 = vld [vmem:[#allocation5 + $0x298] sm:$0xff]
        %v308 = vld [vmem:[#allocation5 + $0x2a0] sm:$0xff]
        %v309 = vld [vmem:[#allocation5 + $0x2a8] sm:$0xff]
        %v310 = vld [vmem:[#allocation5 + $0x2b0] sm:$0xff]
        %v311 = vld [vmem:[#allocation5 + $0x2b8] sm:$0xff]
        %v312 = vld [vmem:[#allocation5 + $0x2c0] sm:$0xff]
        %v313 = vld [vmem:[#allocation5 + $0x2c8] sm:$0xff]
        %v314 = vld [vmem:[#allocation5 + $0x2d0] sm:$0xff]
        %v315 = vld [vmem:[#allocation5 + $0x2d8] sm:$0xff]
        %v316 = vld [vmem:[#allocation5 + $0x2e0] sm:$0xff]
        %v317 = vld [vmem:[#allocation5 + $0x2e8] sm:$0xff]
        %v318 = vld [vmem:[#allocation5 + $0x2f0] sm:$0xff]
        %v319 = vld [vmem:[#allocation5 + $0x2f8] sm:$0xff]
        %v320 = vld [vmem:[#allocation5 + $0x300] sm:$0xff]
        %v321 = vld [vmem:[#allocation5 + $0x308] sm:$0xff]
        %v322 = vld [vmem:[#allocation5 + $0x310] sm:$0xff]
        %v323 = vld [vmem:[#allocation5 + $0x318] sm:$0xff]
        %v324 = vld [vmem:[#allocation5 + $0x320] sm:$0xff]
        %v325 = vld [vmem:[#allocation5 + $0x328] sm:$0xff]
        %v326 = vld [vmem:[#allocation5 + $0x330] sm:$0xff]
        %v327 = vld [vmem:[#allocation5 + $0x338] sm:$0xff]
        %v328 = vld [vmem:[#allocation5 + $0x340] sm:$0xff]
        %v329 = vld [vmem:[#allocation5 + $0x348] sm:$0xff]
        %v330 = vld [vmem:[#allocation5 + $0x350] sm:$0xff]
        %v331 = vld [vmem:[#allocation5 + $0x358] sm:$0xff]
        %v332 = vld [vmem:[#allocation5 + $0x360] sm:$0xff]
        %v333 = vld [vmem:[#allocation5 + $0x368] sm:$0xff]
        %v334 = vld [vmem:[#allocation5 + $0x370] sm:$0xff]
        %v335 = vld [vmem:[#allocation5 + $0x378] sm:$0xff]
        %v336 = vld [vmem:[#allocation5 + $0x380] sm:$0xff]
        %v337 = vld [vmem:[#allocation5 + $0x388] sm:$0xff]
        %v338 = vld [vmem:[#allocation5 + $0x390] sm:$0xff]
        %v339 = vld [vmem:[#allocation5 + $0x398] sm:$0xff]
        %v340 = vld [vmem:[#allocation5 + $0x3a0] sm:$0xff]
        %v341 = vld [vmem:[#allocation5 + $0x3a8] sm:$0xff]
        %v342 = vld [vmem:[#allocation5 + $0x3b0] sm:$0xff]
        %v343 = vld [vmem:[#allocation5 + $0x3b8] sm:$0xff]
        %v344 = vld [vmem:[#allocation5 + $0x3c0] sm:$0xff]
        %v345 = vld [vmem:[#allocation5 + $0x3c8] sm:$0xff]
        %v346 = vld [vmem:[#allocation5 + $0x3d0] sm:$0xff]
        %v347 = vld [vmem:[#allocation5 + $0x3d8] sm:$0xff]
        %v348 = vld [vmem:[#allocation5 + $0x3e0] sm:$0xff]
        %v349 = vld [vmem:[#allocation5 + $0x3e8] sm:$0xff]
        %v350 = vld [vmem:[#allocation5 + $0x3f0] sm:$0xff]
        %v351 = vld [vmem:[#allocation5 + $0x3f8] sm:$0xff]
        %v352 = vld [vmem:[#allocation5 + $0x400] sm:$0xff]
        %v353 = vld [vmem:[#allocation5 + $0x408] sm:$0xff]
        %v354 = vld [vmem:[#allocation5 + $0x410] sm:$0xff]
        %v355 = vld [vmem:[#allocation5 + $0x418] sm:$0xff]
        %v356 = vld [vmem:[#allocation5 + $0x420] sm:$0xff]
        %v357 = vld [vmem:[#allocation5 + $0x428] sm:$0xff]
        %v358 = vld [vmem:[#allocation5 + $0x430] sm:$0xff]
        %v359 = vld [vmem:[#allocation5 + $0x438] sm:$0xff]
        %v360 = vld [vmem:[#allocation5 + $0x440] sm:$0xff]
        %v361 = vld [vmem:[#allocation5 + $0x448] sm:$0xff]
        %v362 = vld [vmem:[#allocation5 + $0x450] sm:$0xff]
        %v363 = vld [vmem:[#allocation5 + $0x458] sm:$0xff]
        %v364 = vld [vmem:[#allocation5 + $0x460] sm:$0xff]
        %v365 = vld [vmem:[#allocation5 + $0x468] sm:$0xff]
        %v366 = vld [vmem:[#allocation5 + $0x470] sm:$0xff]
        %v367 = vld [vmem:[#allocation5 + $0x478] sm:$0xff]
        %v368 = vld [vmem:[#allocation5 + $0x480] sm:$0xff]
        %v369 = vld [vmem:[#allocation5 + $0x488] sm:$0xff]
        %v370 = vld [vmem:[#allocation5 + $0x490] sm:$0xff]
        %v371 = vld [vmem:[#allocation5 + $0x498] sm:$0xff]
        %v372 = vld [vmem:[#allocation5 + $0x4a0] sm:$0xff]
        %v373 = vld [vmem:[#allocation5 + $0x4a8] sm:$0xff]
        %v374 = vld [vmem:[#allocation5 + $0x4b0] sm:$0xff]
        %v375 = vld [vmem:[#allocation5 + $0x4b8] sm:$0xff]
        %v376 = vld [vmem:[#allocation5 + $0x4c0] sm:$0xff]
        %v377 = vld [vmem:[#allocation5 + $0x4c8] sm:$0xff]
        %v378 = vld [vmem:[#allocation5 + $0x4d0] sm:$0xff]
        %v379 = vld [vmem:[#allocation5 + $0x4d8] sm:$0xff]
        %v380 = vld [vmem:[#allocation5 + $0x4e0] sm:$0xff]
        %v381 = vld [vmem:[#allocation5 + $0x4e8] sm:$0xff]
        %v382 = vld [vmem:[#allocation5 + $0x4f0] sm:$0xff]
        %v383 = vld [vmem:[#allocation5 + $0x4f8] sm:$0xff]
        %v384 = vld [vmem:[#allocation5 + $0x500] sm:$0xff]
        %v385 = vld [vmem:[#allocation5 + $0x508] sm:$0xff]
        %v386 = vld [vmem:[#allocation5 + $0x510] sm:$0xff]
        %v387 = vld [vmem:[#allocation5 + $0x518] sm:$0xff]
        %v388 = vld [vmem:[#allocation5 + $0x520] sm:$0xff]
        %v389 = vld [vmem:[#allocation5 + $0x528] sm:$0xff]
        %v390 = vld [vmem:[#allocation5 + $0x530] sm:$0xff]
        %v391 = vld [vmem:[#allocation5 + $0x538] sm:$0xff]
        %v392 = vld [vmem:[#allocation5 + $0x540] sm:$0xff]
        %v393 = vld [vmem:[#allocation5 + $0x548] sm:$0xff]
        %v394 = vld [vmem:[#allocation5 + $0x550] sm:$0xff]
        %v395 = vld [vmem:[#allocation5 + $0x558] sm:$0xff]
        %v396 = vld [vmem:[#allocation5 + $0x560] sm:$0xff]
        %v397 = vld [vmem:[#allocation5 + $0x568] sm:$0xff]
        %v398 = vld [vmem:[#allocation5 + $0x570] sm:$0xff]
        %v399 = vld [vmem:[#allocation5 + $0x578] sm:$0xff]
        %v400 = vld [vmem:[#allocation5 + $0x580] sm:$0xff]
        %v401 = vld [vmem:[#allocation5 + $0x588] sm:$0xff]
        %v402 = vld [vmem:[#allocation5 + $0x590] sm:$0xff]
        %v403 = vld [vmem:[#allocation5 + $0x598] sm:$0xff]
        %v404 = vld [vmem:[#allocation5 + $0x5a0] sm:$0xff]
        %v405 = vld [vmem:[#allocation5 + $0x5a8] sm:$0xff]
        %v406 = vld [vmem:[#allocation5 + $0x5b0] sm:$0xff]
        %v407 = vld [vmem:[#allocation5 + $0x5b8] sm:$0xff]
        %v408 = vld [vmem:[#allocation5 + $0x5c0] sm:$0xff]
        %v409 = vld [vmem:[#allocation5 + $0x5c8] sm:$0xff]
        %v410 = vld [vmem:[#allocation5 + $0x5d0] sm:$0xff]
        %v411 = vld [vmem:[#allocation5 + $0x5d8] sm:$0xff]
        %v412 = vld [vmem:[#allocation5 + $0x5e0] sm:$0xff]
        %v413 = vld [vmem:[#allocation5 + $0x5e8] sm:$0xff]
        %v414 = vld [vmem:[#allocation5 + $0x5f0] sm:$0xff]
        %v415 = vld [vmem:[#allocation5 + $0x5f8] sm:$0xff]
        %v416 = vld [vmem:[#allocation5 + $0x600] sm:$0xff]
        %v417 = vld [vmem:[#allocation5 + $0x608] sm:$0xff]
        %v418 = vld [vmem:[#allocation5 + $0x610] sm:$0xff]
        %v419 = vld [vmem:[#allocation5 + $0x618] sm:$0xff]
        %v420 = vld [vmem:[#allocation5 + $0x620] sm:$0xff]
        %v421 = vld [vmem:[#allocation5 + $0x628] sm:$0xff]
        %v422 = vld [vmem:[#allocation5 + $0x630] sm:$0xff]
        %v423 = vld [vmem:[#allocation5 + $0x638] sm:$0xff]
        %v424 = vld [vmem:[#allocation5 + $0x640] sm:$0xff]
        %v425 = vld [vmem:[#allocation5 + $0x648] sm:$0xff]
        %v426 = vld [vmem:[#allocation5 + $0x650] sm:$0xff]
        %v427 = vld [vmem:[#allocation5 + $0x658] sm:$0xff]
        %v428 = vld [vmem:[#allocation5 + $0x660] sm:$0xff]
        %v429 = vld [vmem:[#allocation5 + $0x668] sm:$0xff]
        %v430 = vld [vmem:[#allocation5 + $0x670] sm:$0xff]
        %v431 = vld [vmem:[#allocation5 + $0x678] sm:$0xff]
        %v432 = vld [vmem:[#allocation5 + $0x680] sm:$0xff]
        %v433 = vld [vmem:[#allocation5 + $0x688] sm:$0xff]
        %v434 = vld [vmem:[#allocation5 + $0x690] sm:$0xff]
        %v435 = vld [vmem:[#allocation5 + $0x698] sm:$0xff]
        %v436 = vld [vmem:[#allocation5 + $0x6a0] sm:$0xff]
        %v437 = vld [vmem:[#allocation5 + $0x6a8] sm:$0xff]
        %v438 = vld [vmem:[#allocation5 + $0x6b0] sm:$0xff]
        %v439 = vld [vmem:[#allocation5 + $0x6b8] sm:$0xff]
        %v440 = vld [vmem:[#allocation5 + $0x6c0] sm:$0xff]
        %v441 = vld [vmem:[#allocation5 + $0x6c8] sm:$0xff]
        %v442 = vld [vmem:[#allocation5 + $0x6d0] sm:$0xff]
        %v443 = vld [vmem:[#allocation5 + $0x6d8] sm:$0xff]
        %v444 = vld [vmem:[#allocation5 + $0x6e0] sm:$0xff]
        %v445 = vld [vmem:[#allocation5 + $0x6e8] sm:$0xff]
        %v446 = vld [vmem:[#allocation5 + $0x6f0] sm:$0xff]
        %v447 = vld [vmem:[#allocation5 + $0x6f8] sm:$0xff]
        %v448 = vld [vmem:[#allocation5 + $0x700] sm:$0xff]
        %v449 = vld [vmem:[#allocation5 + $0x708] sm:$0xff]
        %v450 = vld [vmem:[#allocation5 + $0x710] sm:$0xff]
        %v451 = vld [vmem:[#allocation5 + $0x718] sm:$0xff]
        %v452 = vld [vmem:[#allocation5 + $0x720] sm:$0xff]
        %v453 = vld [vmem:[#allocation5 + $0x728] sm:$0xff]
        %v454 = vld [vmem:[#allocation5 + $0x730] sm:$0xff]
        %v455 = vld [vmem:[#allocation5 + $0x738] sm:$0xff]
        %v456 = vld [vmem:[#allocation5 + $0x740] sm:$0xff]
        %v457 = vld [vmem:[#allocation5 + $0x748] sm:$0xff]
        %v458 = vld [vmem:[#allocation5 + $0x750] sm:$0xff]
        %v459 = vld [vmem:[#allocation5 + $0x758] sm:$0xff]
        %v460 = vld [vmem:[#allocation5 + $0x760] sm:$0xff]
        %v461 = vld [vmem:[#allocation5 + $0x768] sm:$0xff]
        %v462 = vld [vmem:[#allocation5 + $0x770] sm:$0xff]
        %v463 = vld [vmem:[#allocation5 + $0x778] sm:$0xff]
        %v464 = vld [vmem:[#allocation5 + $0x780] sm:$0xff]
        %v465 = vld [vmem:[#allocation5 + $0x788] sm:$0xff]
        %v466 = vld [vmem:[#allocation5 + $0x790] sm:$0xff]
        %v467 = vld [vmem:[#allocation5 + $0x798] sm:$0xff]
        %v468 = vld [vmem:[#allocation5 + $0x7a0] sm:$0xff]
        %v469 = vld [vmem:[#allocation5 + $0x7a8] sm:$0xff]
        %v470 = vld [vmem:[#allocation5 + $0x7b0] sm:$0xff]
        %v471 = vld [vmem:[#allocation5 + $0x7b8] sm:$0xff]
        %v472 = vld [vmem:[#allocation5 + $0x7c0] sm:$0xff]
        %v473 = vld [vmem:[#allocation5 + $0x7c8] sm:$0xff]
        %v474 = vld [vmem:[#allocation5 + $0x7d0] sm:$0xff]
        %v475 = vld [vmem:[#allocation5 + $0x7d8] sm:$0xff]
        %v476 = vld [vmem:[#allocation5 + $0x7e0] sm:$0xff]
        %v477 = vld [vmem:[#allocation5 + $0x7e8] sm:$0xff]
        %v478 = vld [vmem:[#allocation5 + $0x7f0] sm:$0xff]
        %v479 = vld [vmem:[#allocation5 + $0x7f8] sm:$0xff]
        %v480 = vld [vmem:[%s2] sm:$0xf]
        %v482 = vlaneseq
        %v483 = vshrl.u32 %v482, 7
        %v484 = vsub.s32 0, %v483
        %v485 = vrot.slane %v480, %v484
        %v486 = vlaneseq
        %v487 = vshrl.u32 %v486, 7
        %v488 = vsub.s32 1, %v487
        %v489 = vrot.slane %v480, %v488
        %v490 = vlaneseq
        %v491 = vshrl.u32 %v490, 7
        %v492 = vsub.s32 2, %v491
        %v493 = vrot.slane %v480, %v492
        %v494 = vlaneseq
        %v495 = vshrl.u32 %v494, 7
        %v496 = vsub.s32 3, %v495
        %v497 = vrot.slane %v480, %v496
        %502 = vmatprep.subr.mxu0 %v225
        %503 = vmatpush1.msra.mxu0 %v224
        %504 = vmatprep.subr.mxu0 %v229
        %505 = vmatpush1.msra.mxu0 %v228
        %506 = vmatprep.subr.mxu0 %v233
        %507 = vmatpush1.msra.mxu0 %v232
        %508 = vmatprep.subr.mxu0 %v237
        %509 = vmatpush1.msra.mxu0 %v236
        %510 = vmatprep.subr.mxu0 %v241
        %511 = vmatpush1.msra.mxu0 %v240
        %512 = vmatprep.subr.mxu0 %v245
        %513 = vmatpush1.msra.mxu0 %v244
        %514 = vmatprep.subr.mxu0 %v249
        %515 = vmatpush1.msra.mxu0 %v248
        %516 = vmatprep.subr.mxu0 %v253
        %517 = vmatpush1.msra.mxu0 %v252
        %518 = vmatprep.subr.mxu0 %v257
        %519 = vmatpush1.msra.mxu0 %v256
        %520 = vmatprep.subr.mxu0 %v261
        %521 = vmatpush1.msra.mxu0 %v260
        %522 = vmatprep.subr.mxu0 %v265
        %523 = vmatpush1.msra.mxu0 %v264
        %524 = vmatprep.subr.mxu0 %v269
        %525 = vmatpush1.msra.mxu0 %v268
        %526 = vmatprep.subr.mxu0 %v273
        %527 = vmatpush1.msra.mxu0 %v272
        %528 = vmatprep.subr.mxu0 %v277
        %529 = vmatpush1.msra.mxu0 %v276
        %530 = vmatprep.subr.mxu0 %v281
        %531 = vmatpush1.msra.mxu0 %v280
        %532 = vmatprep.subr.mxu0 %v285
        %533 = vmatpush1.msra.mxu0 %v284
        %534 = vmatprep.subr.mxu0 %v289
        %535 = vmatpush1.msra.mxu0 %v288
        %536 = vmatprep.subr.mxu0 %v293
        %537 = vmatpush1.msra.mxu0 %v292
        %538 = vmatprep.subr.mxu0 %v297
        %539 = vmatpush1.msra.mxu0 %v296
        %540 = vmatprep.subr.mxu0 %v301
        %541 = vmatpush1.msra.mxu0 %v300
        %542 = vmatprep.subr.mxu0 %v305
        %543 = vmatpush1.msra.mxu0 %v304
        %544 = vmatprep.subr.mxu0 %v309
        %545 = vmatpush1.msra.mxu0 %v308
        %546 = vmatprep.subr.mxu0 %v313
        %547 = vmatpush1.msra.mxu0 %v312
        %548 = vmatprep.subr.mxu0 %v317
        %549 = vmatpush1.msra.mxu0 %v316
        %550 = vmatprep.subr.mxu0 %v321
        %551 = vmatpush1.msra.mxu0 %v320
        %552 = vmatprep.subr.mxu0 %v325
        %553 = vmatpush1.msra.mxu0 %v324
        %554 = vmatprep.subr.mxu0 %v329
        %555 = vmatpush1.msra.mxu0 %v328
        %556 = vmatprep.subr.mxu0 %v333
        %557 = vmatpush1.msra.mxu0 %v332
        %558 = vmatprep.subr.mxu0 %v337
        %559 = vmatpush1.msra.mxu0 %v336
        %560 = vmatprep.subr.mxu0 %v341
        %561 = vmatpush1.msra.mxu0 %v340
        %562 = vmatprep.subr.mxu0 %v345
        %563 = vmatpush1.msra.mxu0 %v344
        %564 = vmatprep.subr.mxu0 %v349
        %565 = vmatpush1.msra.mxu0 %v348
        %566 = vmatprep.mubr.f32.mxu0 %v221
        %567 = vmatmul.mubr.f32.gmra.mrb[0].mxu0 %v220
        %v568 = vpop.f32.mrb[0].mxu0
        %v569 = vadd.f32 %v485, %v568
        %v570 = vpop.f32.mrb[0].mxu0
        %v571 = vadd.f32 %v489, %v570
        %572 = vdwg.mxu0
        %573 = vmatprep.subr.mxu0 %v353
        %574 = vmatpush1.msra.mxu0 %v352
        %575 = vmatprep.subr.mxu0 %v357
        %576 = vmatpush1.msra.mxu0 %v356
        %577 = vmatprep.subr.mxu0 %v361
        %578 = vmatpush1.msra.mxu0 %v360
        %579 = vmatprep.subr.mxu0 %v365
        %580 = vmatpush1.msra.mxu0 %v364
        %581 = vmatprep.subr.mxu0 %v369
        %582 = vmatpush1.msra.mxu0 %v368
        %583 = vmatprep.subr.mxu0 %v373
        %584 = vmatpush1.msra.mxu0 %v372
        %585 = vmatprep.subr.mxu0 %v377
        %586 = vmatpush1.msra.mxu0 %v376
        %587 = vmatprep.subr.mxu0 %v381
        %588 = vmatpush1.msra.mxu0 %v380
        %589 = vmatprep.subr.mxu0 %v385
        %590 = vmatpush1.msra.mxu0 %v384
        %591 = vmatprep.subr.mxu0 %v389
        %592 = vmatpush1.msra.mxu0 %v388
        %593 = vmatprep.subr.mxu0 %v393
        %594 = vmatpush1.msra.mxu0 %v392
        %595 = vmatprep.subr.mxu0 %v397
        %596 = vmatpush1.msra.mxu0 %v396
        %597 = vmatprep.subr.mxu0 %v401
        %598 = vmatpush1.msra.mxu0 %v400
        %599 = vmatprep.subr.mxu0 %v405
        %600 = vmatpush1.msra.mxu0 %v404
        %601 = vmatprep.subr.mxu0 %v409
        %602 = vmatpush1.msra.mxu0 %v408
        %603 = vmatprep.subr.mxu0 %v413
        %604 = vmatpush1.msra.mxu0 %v412
        %605 = vmatprep.subr.mxu0 %v417
        %606 = vmatpush1.msra.mxu0 %v416
        %607 = vmatprep.subr.mxu0 %v421
        %608 = vmatpush1.msra.mxu0 %v420
        %609 = vmatprep.subr.mxu0 %v425
        %610 = vmatpush1.msra.mxu0 %v424
        %611 = vmatprep.subr.mxu0 %v429
        %612 = vmatpush1.msra.mxu0 %v428
        %613 = vmatprep.subr.mxu0 %v433
        %614 = vmatpush1.msra.mxu0 %v432
        %615 = vmatprep.subr.mxu0 %v437
        %616 = vmatpush1.msra.mxu0 %v436
        %617 = vmatprep.subr.mxu0 %v441
        %618 = vmatpush1.msra.mxu0 %v440
        %619 = vmatprep.subr.mxu0 %v445
        %620 = vmatpush1.msra.mxu0 %v444
        %621 = vmatprep.subr.mxu0 %v449
        %622 = vmatpush1.msra.mxu0 %v448
        %623 = vmatprep.subr.mxu0 %v453
        %624 = vmatpush1.msra.mxu0 %v452
        %625 = vmatprep.subr.mxu0 %v457
        %626 = vmatpush1.msra.mxu0 %v456
        %627 = vmatprep.subr.mxu0 %v461
        %628 = vmatpush1.msra.mxu0 %v460
        %629 = vmatprep.subr.mxu0 %v465
        %630 = vmatpush1.msra.mxu0 %v464
        %631 = vmatprep.subr.mxu0 %v469
        %632 = vmatpush1.msra.mxu0 %v468
        %633 = vmatprep.subr.mxu0 %v473
        %634 = vmatpush1.msra.mxu0 %v472
        %635 = vmatprep.subr.mxu0 %v477
        %636 = vmatpush1.msra.mxu0 %v476
        %637 = vmatprep.mubr.f32.mxu0 %v223
        %638 = vmatmul.mubr.f32.gmra.mrb[0].mxu0 %v222
        %v639 = vpop.f32.mrb[0].mxu0
        %v640 = vadd.f32 %v569, %v639
        %v641 = vpop.f32.mrb[0].mxu0
        %v642 = vadd.f32 %v571, %v641
        %643 = vdwg.mxu0
        %644 = vmatprep.subr.mxu0 %v227
        %645 = vmatpush1.msra.mxu0 %v226
        %646 = vmatprep.subr.mxu0 %v231
        %647 = vmatpush1.msra.mxu0 %v230
        %648 = vmatprep.subr.mxu0 %v235
        %649 = vmatpush1.msra.mxu0 %v234
        %650 = vmatprep.subr.mxu0 %v239
        %651 = vmatpush1.msra.mxu0 %v238
        %652 = vmatprep.subr.mxu0 %v243
        %653 = vmatpush1.msra.mxu0 %v242
        %654 = vmatprep.subr.mxu0 %v247
        %655 = vmatpush1.msra.mxu0 %v246
        %656 = vmatprep.subr.mxu0 %v251
        %657 = vmatpush1.msra.mxu0 %v250
        %658 = vmatprep.subr.mxu0 %v255
        %659 = vmatpush1.msra.mxu0 %v254
        %660 = vmatprep.subr.mxu0 %v259
        %661 = vmatpush1.msra.mxu0 %v258
        %662 = vmatprep.subr.mxu0 %v263
        %663 = vmatpush1.msra.mxu0 %v262
        %664 = vmatprep.subr.mxu0 %v267
        %665 = vmatpush1.msra.mxu0 %v266
        %666 = vmatprep.subr.mxu0 %v271
        %667 = vmatpush1.msra.mxu0 %v270
        %668 = vmatprep.subr.mxu0 %v275
        %669 = vmatpush1.msra.mxu0 %v274
        %670 = vmatprep.subr.mxu0 %v279
        %671 = vmatpush1.msra.mxu0 %v278
        %672 = vmatprep.subr.mxu0 %v283
        %673 = vmatpush1.msra.mxu0 %v282
        %674 = vmatprep.subr.mxu0 %v287
        %675 = vmatpush1.msra.mxu0 %v286
        %676 = vmatprep.subr.mxu0 %v291
        %677 = vmatpush1.msra.mxu0 %v290
        %678 = vmatprep.subr.mxu0 %v295
        %679 = vmatpush1.msra.mxu0 %v294
        %680 = vmatprep.subr.mxu0 %v299
        %681 = vmatpush1.msra.mxu0 %v298
        %682 = vmatprep.subr.mxu0 %v303
        %683 = vmatpush1.msra.mxu0 %v302
        %684 = vmatprep.subr.mxu0 %v307
        %685 = vmatpush1.msra.mxu0 %v306
        %686 = vmatprep.subr.mxu0 %v311
        %687 = vmatpush1.msra.mxu0 %v310
        %688 = vmatprep.subr.mxu0 %v315
        %689 = vmatpush1.msra.mxu0 %v314
        %690 = vmatprep.subr.mxu0 %v319
        %691 = vmatpush1.msra.mxu0 %v318
        %692 = vmatprep.subr.mxu0 %v323
        %693 = vmatpush1.msra.mxu0 %v322
        %694 = vmatprep.subr.mxu0 %v327
        %695 = vmatpush1.msra.mxu0 %v326
        %696 = vmatprep.subr.mxu0 %v331
        %697 = vmatpush1.msra.mxu0 %v330
        %698 = vmatprep.subr.mxu0 %v335
        %699 = vmatpush1.msra.mxu0 %v334
        %700 = vmatprep.subr.mxu0 %v339
        %701 = vmatpush1.msra.mxu0 %v338
        %702 = vmatprep.subr.mxu0 %v343
        %703 = vmatpush1.msra.mxu0 %v342
        %704 = vmatprep.subr.mxu0 %v347
        %705 = vmatpush1.msra.mxu0 %v346
        %706 = vmatprep.subr.mxu0 %v351
        %707 = vmatpush1.msra.mxu0 %v350
        %708 = vmatprep.mubr.f32.mxu0 %v221
        %709 = vmatmul.mubr.f32.gmra.mrb[0].mxu0 %v220
        %v710 = vpop.f32.mrb[0].mxu0
        %v711 = vadd.f32 %v493, %v710
        %v712 = vpop.f32.mrb[0].mxu0
        %v713 = vadd.f32 %v497, %v712
        %714 = vdwg.mxu0
        %715 = vmatprep.subr.mxu0 %v355
        %716 = vmatpush1.msra.mxu0 %v354
        %717 = vmatprep.subr.mxu0 %v359
        %718 = vmatpush1.msra.mxu0 %v358
        %719 = vmatprep.subr.mxu0 %v363
        %720 = vmatpush1.msra.mxu0 %v362
        %721 = vmatprep.subr.mxu0 %v367
        %722 = vmatpush1.msra.mxu0 %v366
        %723 = vmatprep.subr.mxu0 %v371
        %724 = vmatpush1.msra.mxu0 %v370
        %725 = vmatprep.subr.mxu0 %v375
        %726 = vmatpush1.msra.mxu0 %v374
        %727 = vmatprep.subr.mxu0 %v379
        %728 = vmatpush1.msra.mxu0 %v378
        %729 = vmatprep.subr.mxu0 %v383
        %730 = vmatpush1.msra.mxu0 %v382
        %731 = vmatprep.subr.mxu0 %v387
        %732 = vmatpush1.msra.mxu0 %v386
        %733 = vmatprep.subr.mxu0 %v391
        %734 = vmatpush1.msra.mxu0 %v390
        %735 = vmatprep.subr.mxu0 %v395
        %736 = vmatpush1.msra.mxu0 %v394
        %737 = vmatprep.subr.mxu0 %v399
        %738 = vmatpush1.msra.mxu0 %v398
        %739 = vmatprep.subr.mxu0 %v403
        %740 = vmatpush1.msra.mxu0 %v402
        %741 = vmatprep.subr.mxu0 %v407
        %742 = vmatpush1.msra.mxu0 %v406
        %743 = vmatprep.subr.mxu0 %v411
        %744 = vmatpush1.msra.mxu0 %v410
        %745 = vmatprep.subr.mxu0 %v415
        %746 = vmatpush1.msra.mxu0 %v414
        %747 = vmatprep.subr.mxu0 %v419
        %748 = vmatpush1.msra.mxu0 %v418
        %749 = vmatprep.subr.mxu0 %v423
        %750 = vmatpush1.msra.mxu0 %v422
        %751 = vmatprep.subr.mxu0 %v427
        %752 = vmatpush1.msra.mxu0 %v426
        %753 = vmatprep.subr.mxu0 %v431
        %754 = vmatpush1.msra.mxu0 %v430
        %755 = vmatprep.subr.mxu0 %v435
        %756 = vmatpush1.msra.mxu0 %v434
        %757 = vmatprep.subr.mxu0 %v439
        %758 = vmatpush1.msra.mxu0 %v438
        %759 = vmatprep.subr.mxu0 %v443
        %760 = vmatpush1.msra.mxu0 %v442
        %761 = vmatprep.subr.mxu0 %v447
        %762 = vmatpush1.msra.mxu0 %v446
        %763 = vmatprep.subr.mxu0 %v451
        %764 = vmatpush1.msra.mxu0 %v450
        %765 = vmatprep.subr.mxu0 %v455
        %766 = vmatpush1.msra.mxu0 %v454
        %767 = vmatprep.subr.mxu0 %v459
        %768 = vmatpush1.msra.mxu0 %v458
        %769 = vmatprep.subr.mxu0 %v463
        %770 = vmatpush1.msra.mxu0 %v462
        %771 = vmatprep.subr.mxu0 %v467
        %772 = vmatpush1.msra.mxu0 %v466
        %773 = vmatprep.subr.mxu0 %v471
        %774 = vmatpush1.msra.mxu0 %v470
        %775 = vmatprep.subr.mxu0 %v475
        %776 = vmatpush1.msra.mxu0 %v474
        %777 = vmatprep.subr.mxu0 %v479
        %778 = vmatpush1.msra.mxu0 %v478
        %779 = vmatprep.mubr.f32.mxu0 %v223
        %780 = vmatmul.mubr.f32.gmra.mrb[0].mxu0 %v222
        %v781 = vpop.f32.mrb[0].mxu0
        %v782 = vadd.f32 %v711, %v781
        %v783 = vpop.f32.mrb[0].mxu0
        %v784 = vadd.f32 %v713, %v783
        %785 = vdwg.mxu0
        %786 = vst [vmem:[%s219] sm:$0xff] %v640
        %787 = vst [vmem:[%s219 + $0x8] sm:$0xff] %v642
        %788 = vst [vmem:[%s219 + $0x10] sm:$0xff] %v782
        %789 = vst [vmem:[%s219 + $0x18] sm:$0xff] %v784
        %s790 = sand.u32 %s113, 1
        %s791 = scalar_lea.sflag [#allocation4], %s790
        %s792 = sand.u32 %s113, 1
        %s793 = smul.addr %s792, 32
        %s794 = scalar_lea.vmem [#allocation7], %s793
        // Predicated region
        $region41: #{tpu_custom_call.1} parent=31 // pred_check
          %p795 = pneg %p123
        $region42: #{tpu_custom_call.1} parent=31 // pred_check_branch
          %797 = sbr.rel (%p795) target = $region44
        $region43: #{tpu_custom_call.1} parent=31 // pred_region
          %s799 = ssub.s32 512, 512
          %800 = vsyncadd %s791, %s799
          %s801 = smul.addr %s26, 4
          %s802 = smul.addr %s25, 4
          %s803 = sadd.s32 %s801, %s802
          %s804 = smul.addr %s803, 128
          %s805 = scalar_lea.hbm %s3, %s804
          %s807 = sshll.u32 %s794, 4
          %s808 = int_to_ptr.vmem [resolvable:$true] %s807
          %810 = dma.vmem_to_hbm [thread:$0]  %s808, 512, %s805, %s791
        $region44: #{tpu_custom_call.1} parent=31 // pred_fallthru
          _
      $region32: #{tpu_custom_call.1} parent=5 // pred_fallthru
        _
      %p811 = scmp.le.s32.totalorder 2, %s16
      // Predicated region
      $region45: #{tpu_custom_call.1} parent=5 // pred_check
        %p812 = pneg %p811
      $region46: #{tpu_custom_call.1} parent=5 // pred_check_branch
        %814 = sbr.rel (%p812) target = $region48
      $region47: #{tpu_custom_call.1} parent=5 // pred_region
        %s815 = ssub.s32 %s16, 2
        // Predicated region
        $region49: #{tpu_custom_call.1} parent=47 // pred_check
          %p816 = pneg %p129
        $region50: #{tpu_custom_call.1} parent=47 // pred_check_branch
          %818 = sbr.rel (%p816) target = $region52
        $region51: #{tpu_custom_call.1} parent=47 // pred_region
          %s819 = sand.u32 %s114, 1
          %s820 = scalar_lea.sflag [#allocation4], %s819
          %s821 = sand.u32 %s114, 1
          %s822 = smul.addr %s821, 32
          %s823 = scalar_lea.vmem [#allocation7], %s822
          %824 = dma.done %s820, 512
        $region52: #{tpu_custom_call.1} parent=47 // pred_fallthru
          _
      $region48: #{tpu_custom_call.1} parent=5 // pred_fallthru
        _
    $region6: #{tpu_custom_call.1} parent=1 // loop_footer
      %s20 = sadd.s32 1, %s16
    $region7: #{tpu_custom_call.1} parent=1 // loop_footer_branch
      %15 = sbr.rel target = $region3
    $region8: #{tpu_custom_call.1} parent=1 // loop_exit
      _
    %825 = vsyncpa [#allocation3], 1
    %s826 = scalar_lea.sflag [#allocation3], 1
    %827 = vsyncpa %s826, 1
    %828 = vsyncpa [#allocation6], 1
    %829 = vsyncpa [#allocation4], 1
    %s830 = scalar_lea.sflag [#allocation4], 1
    %831 = vsyncpa %s830, 1

</llo_original>
